<compile_context>
chip_gen: v7x
topology: tpu7x:2x2x1
jax: 0.10.0
libtpu: 0.0.40
codegen_flags: <defaults>
</compile_context>

<pallas_src>
import functools

import jax
import jax.numpy as jnp
from jax.experimental import pallas as pl
from jax.experimental.pallas import tpu as pltpu

_LANE = 128           # TPU lane width (last-dim vector width)
_ROW_TILE = 1024      # row tile for the gridded path (fits v7x 64 MiB VMEM easily)
_SINGLE_TILE_MAX_ROWS = 1024  # below this, skip the grid entirely


def _round_up(n: int, m: int) -> int:
    return ((n + m - 1) // m) * m


def _linear_leakyrelu_kernel(x_ref, w_ref, b_ref, o_ref):
    # x_ref : (TM, Cin)       VMEM
    # w_ref : (Cin, Cout_p)   VMEM  (pre-transposed: K on sublanes, N on lanes)
    # b_ref : (1, Cout_p)     VMEM  (f32)
    # o_ref : (TM, Cout_p)    VMEM  (lane-dense: Cout_p % 128 == 0)
    y = jnp.dot(x_ref[...], w_ref[...], preferred_element_type=jnp.float32)
    y = y + b_ref[...]                       # bias broadcast over rows, f32
    # LeakyReLU(0.2): max(y, 0.2*y) is exact for slope in (0, 1).
    o_ref[...] = jnp.maximum(y, 0.2 * y).astype(o_ref.dtype)


def prepare_params(weight, bias):
    """Amortize the per-call layout work (do this ONCE per parameter set).

    weight: (Cout, Cin) f32 -- native PyTorch nn.Linear layout
    bias:   (Cout,)     f32
    returns (w_t, b2):
        w_t: (Cin, Cout_p) with Cout_p = round_up(Cout, 128), zero-padded cols
        b2 : (1, Cout_p)   zero-padded
    """
    cout, _ = weight.shape
    cout_p = _round_up(cout, _LANE)
    w_t = weight.T                                       # (Cin, Cout)
    if cout_p != cout:
        w_t = jnp.pad(w_t, ((0, 0), (0, cout_p - cout)))
        bias = jnp.pad(bias, (0, cout_p - cout))
    return w_t, bias.reshape(1, cout_p)


@functools.partial(jax.jit, static_argnames=("out_features", "matmul_dtype"))
def simple_1d_discriminator_block(x, w_t, b2, *, out_features, matmul_dtype=None):
    """Forward of the PyTorch block on pre-prepared parameters.

    x:   (..., Cin)                     -- leading dims are flattened into rows
    w_t: (Cin, Cout_p) from prepare_params
    b2:  (1, Cout_p)   from prepare_params
    returns (..., out_features)
    """
    *lead, cin = x.shape
    m = 1
    for d in lead:
        m *= d
    x2 = x.reshape(m, cin)
    cout_p = w_t.shape[1]
    out_dtype = x.dtype

    if matmul_dtype is not None:
        # bf16 (etc.) MXU operands; accumulation / epilogue stay f32 in-kernel.
        x2 = x2.astype(matmul_dtype)
        w_t = w_t.astype(matmul_dtype)

    itemsize = jnp.dtype(x2.dtype).itemsize
    flops = 2 * m * cin * cout_p
    bytes_accessed = (m * cin * itemsize + cin * cout_p * itemsize
                      + cout_p * 4 + m * cout_p * jnp.dtype(out_dtype).itemsize)
    cost = pl.CostEstimate(flops=flops, transcendentals=0,
                           bytes_accessed=bytes_accessed)

    if m <= _SINGLE_TILE_MAX_ROWS:
        # Single-tile, un-gridded call: everything lands in VMEM once, no
        # software-pipeline machinery for a 1-point grid.
        out = pl.pallas_call(
            _linear_leakyrelu_kernel,
            out_shape=jax.ShapeDtypeStruct((m, cout_p), out_dtype),
            in_specs=[
                pl.BlockSpec(memory_space=pltpu.MemorySpace.VMEM),  # x
                pl.BlockSpec(memory_space=pltpu.MemorySpace.VMEM),  # w_t
                pl.BlockSpec(memory_space=pltpu.MemorySpace.VMEM),  # bias
            ],
            out_specs=pl.BlockSpec(memory_space=pltpu.MemorySpace.VMEM),
            cost_estimate=cost,
        )(x2, w_t, b2)
    else:
        # Row-gridded path: weight/bias stay resident (index_map -> (0, 0)),
        # rows tiled at _ROW_TILE, batch axis marked parallel (megacore on v7x).
        tm = _ROW_TILE
        out = pl.pallas_call(
            _linear_leakyrelu_kernel,
            out_shape=jax.ShapeDtypeStruct((m, cout_p), out_dtype),
            grid=(pl.cdiv(m, tm),),
            in_specs=[
                pl.BlockSpec((tm, cin), lambda i: (i, 0)),
                pl.BlockSpec((cin, cout_p), lambda i: (0, 0)),
                pl.BlockSpec((1, cout_p), lambda i: (0, 0)),
            ],
            out_specs=pl.BlockSpec((tm, cout_p), lambda i: (i, 0)),
            compiler_params=pltpu.CompilerParams(
                dimension_semantics=("parallel",)),
            cost_estimate=cost,
        )(x2, w_t, b2)

    out = out[:, :out_features]
    return out.reshape(*lead, out_features)


def _reference(x, weight, bias):
    y = x @ weight.T + bias
    return jnp.where(y >= 0, y, 0.2 * y)


if __name__ == "__main__":
    # Small shapes consistent with the module's forward:
    # Linear(input_channels=32, output_channels=64) on a (batch, Cin) tensor.
    batch, input_channels, output_channels = 8, 32, 64

    key = jax.random.PRNGKey(0)
    kx, kw, kb, kx2 = jax.random.split(key, 4)

    x = jax.random.normal(kx, (batch, input_channels), dtype=jnp.float32)
    # Deterministic params (mimicking nn.Linear uniform(-1/sqrt(fan_in), ...)).
    bound = 1.0 / (input_channels ** 0.5)
    weight = jax.random.uniform(kw, (output_channels, input_channels),
                                minval=-bound, maxval=bound, dtype=jnp.float32)
    bias = jax.random.uniform(kb, (output_channels,),
                              minval=-bound, maxval=bound, dtype=jnp.float32)

    # Layout prep is done ONCE, outside the per-call path.
    w_t, b2 = prepare_params(weight, bias)

    # --- small / un-gridded path ---
    out = simple_1d_discriminator_block(x, w_t, b2,
                                        out_features=output_channels)
    out = jax.block_until_ready(out)
    ref = _reference(x, weight, bias)
    assert out.shape == (batch, output_channels)
    assert jnp.allclose(out, ref, atol=1e-5, rtol=1e-5), "mismatch (small path)"

    # --- gridded path (flattened batch*seq rows, incl. a partial last tile) ---
    rows = 2 * _ROW_TILE + 5
    x_big = jax.random.normal(kx2, (rows, input_channels), dtype=jnp.float32)
    out_big = simple_1d_discriminator_block(x_big, w_t, b2,
                                            out_features=output_channels)
    out_big = jax.block_until_ready(out_big)
    ref_big = _reference(x_big, weight, bias)
    assert out_big.shape == (rows, output_channels)
    assert jnp.allclose(out_big, ref_big, atol=1e-5, rtol=1e-5), \
        "mismatch (gridded path)"

    print("KERNEL_OK")
</pallas_src>

<mosaic_0001>
module attributes {stable_mosaic.version = 11 : i64} {
  func.func @_linear_leakyrelu_kernel(%arg0: memref<8x32xf32, #tpu.memory_space<vmem>>, %arg1: memref<32x128xf32, #tpu.memory_space<vmem>>, %arg2: memref<1x128xf32, #tpu.memory_space<vmem>>, %arg3: memref<8x128xf32, #tpu.memory_space<vmem>>) attributes {dimension_semantics = [], scalar_prefetch = 0 : i64, scratch_operands = 0 : i64, tpu.core_type = #tpu.core_type<tc>} {
    %c0 = arith.constant 0 : index
    %c0_0 = arith.constant 0 : index
    %0 = vector.load %arg0[%c0, %c0_0] : memref<8x32xf32, #tpu.memory_space<vmem>>, vector<8x32xf32>
    %c0_1 = arith.constant 0 : index
    %c0_2 = arith.constant 0 : index
    %1 = vector.load %arg1[%c0_1, %c0_2] : memref<32x128xf32, #tpu.memory_space<vmem>>, vector<32x128xf32>
    %cst = arith.constant dense<0.000000e+00> : vector<8x128xf32>
    %2 = tpu.matmul %0, %1, %cst {dimension_numbers = #tpu.dot_dimension_numbers<[1], [0], [0], [1], [0, 0, 1, 1], [], []>} : vector<8x32xf32>, vector<32x128xf32>, vector<8x128xf32> -> vector<8x128xf32>
    %c0_3 = arith.constant 0 : index
    %c0_4 = arith.constant 0 : index
    %3 = vector.load %arg2[%c0_3, %c0_4] : memref<1x128xf32, #tpu.memory_space<vmem>>, vector<1x128xf32>
    %4 = vector.broadcast %3 : vector<1x128xf32> to vector<8x128xf32>
    %5 = arith.addf %2, %4 : vector<8x128xf32>
    %cst_5 = arith.constant 2.000000e-01 : f32
    %6 = vector.broadcast %cst_5 : f32 to vector<8x128xf32>
    %7 = arith.mulf %6, %5 : vector<8x128xf32>
    %8 = arith.maximumf %5, %7 : vector<8x128xf32>
    %c0_6 = arith.constant 0 : index
    %c0_7 = arith.constant 0 : index
    %9 = vector.load %arg3[%c0_6, %c0_7] : memref<8x128xf32, #tpu.memory_space<vmem>>, vector<8x128xf32>
    tpu.vector_store %arg3[%c0_6, %c0_7], %8 {strides = array<i32>} : memref<8x128xf32, #tpu.memory_space<vmem>>, vector<8x128xf32>,
    return
  }
}

</mosaic_0001>

<llo_original>
// kernel: simple_1d_discriminator_block.1
$region0: #{simple_1d_discriminator_block.1}
  #allocation0 [shape = 'u32[]', space=smem, size = 0x4, offset = 0x4, fixed_abs, tag = 'smem constant byte address 0x4 - core index']
  #allocation1 [shape = 'u32[144,128]{1,0:T(1,128)}', space=vmem, size = 0x12000, scoped, tag = 'internal scratch']
  %s0 = inlined_call_operand.hbm [shape: f32[8,32], index: 0, kind: input, shape index: {}]
  %s1 = inlined_call_operand.hbm [shape: f32[32,128], index: 1, kind: input, shape index: {}]
  %s2 = inlined_call_operand.vmem [shape: f32[1,128], index: 2, kind: input, shape index: {}]
  %s3 = inlined_call_operand.hbm [shape: f32[8,128], index: 3, kind: output, shape index: {}]
  %s4 = sld [smem:[#allocation0]]
  $region30: #{simple_1d_discriminator_block.1} parent=0
    _
  %s6 = ssub.s32 1, %s4
  %s7 = scalar_select 0, %s6, %s4
  $region1: #{simple_1d_discriminator_block.1} parent=0
    #allocation2 [shape = 'u8[4096]{0}', space=vmem, size = 0x1000, scoped, tag = 'input window, operand 0, single buffered']
    #allocation3 [shape = 's32[1]{0}', space=sflag, size = 0x4, scoped, tag = 'scoped memory for simple_1d_discriminator_block.1']
    #allocation4 [shape = 's32[1]{0}', space=sflag, size = 0x4, scoped, tag = 'scoped memory for simple_1d_discriminator_block.1']
    #allocation5 [shape = 'u8[16384]{0}', space=vmem, size = 0x4000, scoped, tag = 'input window, operand 1, single buffered']
    #allocation6 [shape = 's32[1]{0}', space=sflag, size = 0x4, scoped, tag = 'scoped memory for simple_1d_discriminator_block.1']
    #allocation7 [shape = 'u8[4096]{0}', space=vmem, size = 0x1000, scoped, tag = 'output window, operand 0, single buffered']
    %8 = vsyncpa [#allocation3], 0
    %9 = vsyncpa [#allocation6], 0
    %10 = vsyncpa [#allocation4], 0
    // Predicated region
    $region2: #{simple_1d_discriminator_block.1} parent=1 // pred_check
      _
    $region3: #{simple_1d_discriminator_block.1} parent=1 // pred_check_branch
      %12 = sbr.rel (0) target = $region5
    $region4: #{simple_1d_discriminator_block.1} parent=1 // pred_region
      %s14 = ssub.s32 128, 128
      %15 = vsyncadd [#allocation3], %s14
      %s17 = sshll.u32 [#allocation2], 4
      %s18 = int_to_ptr.vmem [resolvable:$true] %s17
      %20 = dma.hbm_to_vmem [thread:$0]  %s0, 128, %s18, [#allocation3]
    $region5: #{simple_1d_discriminator_block.1} parent=1 // pred_fallthru
      _
    // Predicated region
    $region6: #{simple_1d_discriminator_block.1} parent=1 // pred_check
      _
    $region7: #{simple_1d_discriminator_block.1} parent=1 // pred_check_branch
      %22 = sbr.rel (0) target = $region9
    $region8: #{simple_1d_discriminator_block.1} parent=1 // pred_region
      %s24 = ssub.s32 512, 512
      %25 = vsyncadd [#allocation6], %s24
      %s26 = sshll.u32 [#allocation5], 4
      %s27 = int_to_ptr.vmem [resolvable:$true] %s26
      %32 = dma.hbm_to_vmem [thread:$0]  %s1, 512, %s27, [#allocation6], 128, 128, 8
    $region9: #{simple_1d_discriminator_block.1} parent=1 // pred_fallthru
      _
    // Predicated region
    $region10: #{simple_1d_discriminator_block.1} parent=1 // pred_check
      _
    $region11: #{simple_1d_discriminator_block.1} parent=1 // pred_check_branch
      %34 = sbr.rel (0) target = $region13
    $region12: #{simple_1d_discriminator_block.1} parent=1 // pred_region
      _
    $region13: #{simple_1d_discriminator_block.1} parent=1 // pred_fallthru
      _
    // Predicated region
    $region14: #{simple_1d_discriminator_block.1} parent=1 // pred_check
      _
    $region15: #{simple_1d_discriminator_block.1} parent=1 // pred_check_branch
      %36 = sbr.rel (0) target = $region17
    $region16: #{simple_1d_discriminator_block.1} parent=1 // pred_region
      %37 = dma.done [#allocation3], 128
    $region17: #{simple_1d_discriminator_block.1} parent=1 // pred_fallthru
      _
    // Predicated region
    $region18: #{simple_1d_discriminator_block.1} parent=1 // pred_check
      _
    $region19: #{simple_1d_discriminator_block.1} parent=1 // pred_check_branch
      %39 = sbr.rel (0) target = $region21
    $region20: #{simple_1d_discriminator_block.1} parent=1 // pred_region
      %40 = dma.done [#allocation6], 512
    $region21: #{simple_1d_discriminator_block.1} parent=1 // pred_fallthru
      _
    %v41 = vld [vmem:[#allocation2] sm:$0xff]
    %v42 = vld [vmem:[#allocation5] sm:$0xff]
    %v43 = vld [vmem:[#allocation5 + $0x8] sm:$0xff]
    %v44 = vld [vmem:[#allocation5 + $0x10] sm:$0xff]
    %v45 = vld [vmem:[#allocation5 + $0x18] sm:$0xff]
    %v46 = vld [vmem:[%s2] sm:$0x1]
    %v48 = vlaneseq
    %v49 = vshrl.u32 %v48, 7
    %v50 = vsub.s32 0, %v49
    %v51 = vrot.slane %v46, %v50
    %vm53 = vcmask 261120
    %v55 = vsel %vm53, %v41, 0
    %57 = vmatprep.subr.mxu0 0.0
    %58 = vmatpush1.msra.mxu0 %v42
    %59 = vmatprep.subr.mxu0 0.0
    %60 = vmatpush1.msra.mxu0 %v43
    %61 = vmatprep.subr.mxu0 0.0
    %62 = vmatpush1.msra.mxu0 %v44
    %63 = vmatprep.subr.mxu0 0.0
    %64 = vmatpush1.msra.mxu0 %v45
    %65 = vmatprep.subr.mxu0 0.0
    %66 = vmatpush1.msra.mxu0 0.0
    %67 = vmatprep.subr.mxu0 0.0
    %68 = vmatpush1.msra.mxu0 0.0
    %69 = vmatprep.subr.mxu0 0.0
    %70 = vmatpush1.msra.mxu0 0.0
    %71 = vmatprep.subr.mxu0 0.0
    %72 = vmatpush1.msra.mxu0 0.0
    %73 = vmatprep.subr.mxu0 0.0
    %74 = vmatpush1.msra.mxu0 0.0
    %75 = vmatprep.subr.mxu0 0.0
    %76 = vmatpush1.msra.mxu0 0.0
    %77 = vmatprep.subr.mxu0 0.0
    %78 = vmatpush1.msra.mxu0 0.0
    %79 = vmatprep.subr.mxu0 0.0
    %80 = vmatpush1.msra.mxu0 0.0
    %81 = vmatprep.subr.mxu0 0.0
    %82 = vmatpush1.msra.mxu0 0.0
    %83 = vmatprep.subr.mxu0 0.0
    %84 = vmatpush1.msra.mxu0 0.0
    %85 = vmatprep.subr.mxu0 0.0
    %86 = vmatpush1.msra.mxu0 0.0
    %87 = vmatprep.subr.mxu0 0.0
    %88 = vmatpush1.msra.mxu0 0.0
    %89 = vmatprep.subr.mxu0 0.0
    %90 = vmatpush1.msra.mxu0 0.0
    %91 = vmatprep.subr.mxu0 0.0
    %92 = vmatpush1.msra.mxu0 0.0
    %93 = vmatprep.subr.mxu0 0.0
    %94 = vmatpush1.msra.mxu0 0.0
    %95 = vmatprep.subr.mxu0 0.0
    %96 = vmatpush1.msra.mxu0 0.0
    %97 = vmatprep.subr.mxu0 0.0
    %98 = vmatpush1.msra.mxu0 0.0
    %99 = vmatprep.subr.mxu0 0.0
    %100 = vmatpush1.msra.mxu0 0.0
    %101 = vmatprep.subr.mxu0 0.0
    %102 = vmatpush1.msra.mxu0 0.0
    %103 = vmatprep.subr.mxu0 0.0
    %104 = vmatpush1.msra.mxu0 0.0
    %105 = vmatprep.subr.mxu0 0.0
    %106 = vmatpush1.msra.mxu0 0.0
    %107 = vmatprep.subr.mxu0 0.0
    %108 = vmatpush1.msra.mxu0 0.0
    %109 = vmatprep.subr.mxu0 0.0
    %110 = vmatpush1.msra.mxu0 0.0
    %111 = vmatprep.subr.mxu0 0.0
    %112 = vmatpush1.msra.mxu0 0.0
    %113 = vmatprep.subr.mxu0 0.0
    %114 = vmatpush1.msra.mxu0 0.0
    %115 = vmatprep.subr.mxu0 0.0
    %116 = vmatpush1.msra.mxu0 0.0
    %117 = vmatprep.subr.mxu0 0.0
    %118 = vmatpush1.msra.mxu0 0.0
    %119 = vmatprep.subr.mxu0 0.0
    %120 = vmatpush1.msra.mxu0 0.0
    %121 = vmatprep.mubr.f32.mxu0 0.0
    %122 = vmatmul.mubr.f32.gmra.mrb[0].mxu0 %v55
    %v123 = vpop.f32.mrb[0].mxu0
    %v124 = vadd.f32 %v51, %v123
    %v125 = vpop.f32.mrb[0].mxu0
    %126 = vdwg.mxu0
    %v127 = vmul.f32 %v124, 0.2
    %v128 = vmax.f32 %v124, %v127
    %129 = vst [vmem:[#allocation7] sm:$0xff] %v128
    // Predicated region
    $region22: #{simple_1d_discriminator_block.1} parent=1 // pred_check
      _
    $region23: #{simple_1d_discriminator_block.1} parent=1 // pred_check_branch
      %131 = sbr.rel (0) target = $region25
    $region24: #{simple_1d_discriminator_block.1} parent=1 // pred_region
      %s133 = ssub.s32 128, 128
      %134 = vsyncadd [#allocation4], %s133
      %s136 = sshll.u32 [#allocation7], 4
      %s137 = int_to_ptr.vmem [resolvable:$true] %s136
      %139 = dma.vmem_to_hbm [thread:$0]  %s137, 128, %s3, [#allocation4]
    $region25: #{simple_1d_discriminator_block.1} parent=1 // pred_fallthru
      _
    // Predicated region
    $region26: #{simple_1d_discriminator_block.1} parent=1 // pred_check
      _
    $region27: #{simple_1d_discriminator_block.1} parent=1 // pred_check_branch
      %141 = sbr.rel (0) target = $region29
    $region28: #{simple_1d_discriminator_block.1} parent=1 // pred_region
      %142 = dma.done [#allocation4], 128
    $region29: #{simple_1d_discriminator_block.1} parent=1 // pred_fallthru
      _
    %143 = vsyncpa [#allocation3], 1
    %144 = vsyncpa [#allocation6], 1
    %145 = vsyncpa [#allocation4], 1

</llo_original>
